<compile_context>
chip_gen: v7x
topology: tpu7x:2x2x1
jax: 0.10.0
libtpu: 0.0.40
codegen_flags: <defaults>
</compile_context>

<pallas_src>
import functools

import jax
import jax.numpy as jnp
from jax.experimental import pallas as pl
from jax.experimental.pallas import tpu as pltpu


def _round_up(a: int, b: int) -> int:
    return (a + b - 1) // b * b


def _pick_tile(padded: int, target: int, align: int) -> int:
    """Largest multiple of `align` that divides `padded` and is <= target."""
    target = max(align, min(target, padded))
    t = (target // align) * align
    while t > align and padded % t != 0:
        t -= align
    return t


# ----------------------------- kernels --------------------------------------

def _linear_kernel_single_k(x_ref, wt_ref, b_ref, o_ref):
    # Single K step (classifier-head case): no accumulator, no pl.when.
    acc = jnp.dot(x_ref[...], wt_ref[...], preferred_element_type=jnp.float32)
    o_ref[...] = (acc + b_ref[...].astype(jnp.float32)).astype(o_ref.dtype)


def _linear_kernel_f32_out(x_ref, wt_ref, b_ref, o_ref):
    # f32 output: accumulate directly into the resident output block
    # (its block index (i, j) is independent of the K grid axis).
    # Bias is folded into the k == 0 init.
    @pl.when(pl.program_id(2) == 0)
    def _():
        o_ref[...] = jnp.broadcast_to(b_ref[...].astype(o_ref.dtype), o_ref.shape)

    o_ref[...] += jnp.dot(x_ref[...], wt_ref[...],
                          preferred_element_type=jnp.float32)


def _linear_kernel_acc(x_ref, wt_ref, b_ref, o_ref, acc_ref):
    # Narrow output dtype: f32 scratch accumulator, cast only on the last K step.
    k = pl.program_id(2)

    @pl.when(k == 0)
    def _():
        acc_ref[...] = jnp.broadcast_to(b_ref[...].astype(jnp.float32),
                                        acc_ref.shape)

    acc_ref[...] += jnp.dot(x_ref[...], wt_ref[...],
                            preferred_element_type=jnp.float32)

    @pl.when(k == pl.num_programs(2) - 1)
    def _():
        o_ref[...] = acc_ref[...].astype(o_ref.dtype)


# ----------------------------- wrapper ---------------------------------------

def prepare_z_to_y_params(weight, bias, compute_dtype=None):
    """One-time parameter re-layout (call once, reuse across forwards).

    weight: (N, K) in PyTorch nn.Linear layout; bias: (N,).
    Returns (w_kn, b_row, out_n) with w_kn: (Kp, Np) MXU-native layout
    (K on sublanes, N on lanes, both padded to alignment), b_row: (1, Np).
    Optionally casts the weight to `compute_dtype` (e.g. bf16).
    """
    N, K = weight.shape
    Kp = _round_up(K, 128)
    Np = _round_up(N, 128)
    w_kn = weight.T
    if compute_dtype is not None:
        w_kn = w_kn.astype(compute_dtype)
    if (Kp, Np) != (K, N):
        w_kn = jnp.pad(w_kn, ((0, Kp - K), (0, Np - N)))
    b_row = bias if Np == N else jnp.pad(bias, (0, Np - N))
    return w_kn, b_row.reshape(1, Np), N


_VMEM_TILE_BUDGET = 32 * 1024 * 1024  # keeps double-buffered tiles v7x-safe


@functools.partial(
    jax.jit, static_argnames=("out_n", "tm_target", "tn_target", "tk_target"))
def z_to_y_forward(x, w_kn, b_row, *, out_n,
                   tm_target=512, tn_target=512, tk_target=1024):
    """x: (M, K); w_kn: (Kp, Np) pre-transposed/padded; b_row: (1, Np)."""
    M, K = x.shape
    Kp, Np = w_kn.shape
    assert Kp % 128 == 0 and Np % 128 == 0 and Kp >= K and Np >= out_n

    orig_dtype = x.dtype
    Mp = _round_up(M, 8)

    if x.dtype != w_kn.dtype:
        x = x.astype(w_kn.dtype)
    if (Mp, Kp) != (M, K):          # skip the pad copy in the aligned case
        x = jnp.pad(x, ((0, Mp - M), (0, Kp - K)))

    # Tile sizes: divisors of the (already aligned) padded sizes, <= target.
    tm = _pick_tile(Mp, tm_target, 8)
    tn = _pick_tile(Np, tn_target, 128)
    tk = _pick_tile(Kp, tk_target, 128)

    in_bytes = x.dtype.itemsize
    out_bytes = jnp.dtype(orig_dtype).itemsize

    def _vmem_bytes(tm_, tn_, tk_):
        bufs = 2 * (tm_ * tk_ * in_bytes + tk_ * tn_ * in_bytes + tn_ * out_bytes)
        bufs += 2 * tm_ * tn_ * out_bytes
        if orig_dtype != jnp.float32 and Kp // tk_ > 1:
            bufs += tm_ * tn_ * 4   # f32 scratch accumulator
        return bufs

    # Shrink tiles if needed so double-buffered working set stays in budget.
    while _vmem_bytes(tm, tn, tk) > _VMEM_TILE_BUDGET and tk > 128:
        tk = _pick_tile(Kp, tk // 2, 128)
    while _vmem_bytes(tm, tn, tk) > _VMEM_TILE_BUDGET and tn > 128:
        tn = _pick_tile(Np, tn // 2, 128)
    while _vmem_bytes(tm, tn, tk) > _VMEM_TILE_BUDGET and tm > 8:
        tm = _pick_tile(Mp, tm // 2, 8)

    # v7x megacore: make sure the parallel axes have >= 2 blocks when possible
    # (small-N classifier heads would otherwise leave one TensorCore idle).
    if (Mp // tm) * (Np // tn) < 2 and Mp // 8 >= 2:
        tm = _pick_tile(Mp, max(8, tm // 2), 8)

    grid = (Mp // tm, Np // tn, Kp // tk)
    nkt = grid[2]

    if nkt == 1:
        kernel = _linear_kernel_single_k
        scratch = []
    elif orig_dtype == jnp.float32:
        kernel = _linear_kernel_f32_out
        scratch = []
    else:
        kernel = _linear_kernel_acc
        scratch = [pltpu.VMEM((tm, tn), jnp.float32)]

    needed = _vmem_bytes(tm, tn, tk)
    vmem_limit = int(min(48 * 1024 * 1024,
                         max(needed + needed // 2, 16 * 1024 * 1024)))

    out_p = pl.pallas_call(
        kernel,
        out_shape=jax.ShapeDtypeStruct((Mp, Np), orig_dtype),
        grid_spec=pltpu.PrefetchScalarGridSpec(
            num_scalar_prefetch=0,
            grid=grid,
            in_specs=[
                pl.BlockSpec((tm, tk), lambda i, j, k: (i, k)),   # x tile
                pl.BlockSpec((tk, tn), lambda i, j, k: (k, j)),   # W^T tile
                pl.BlockSpec((1, tn), lambda i, j, k: (0, j)),    # bias tile
            ],
            out_specs=pl.BlockSpec((tm, tn), lambda i, j, k: (i, j)),
            scratch_shapes=scratch,
        ),
        compiler_params=pltpu.CompilerParams(
            dimension_semantics=("parallel", "parallel", "arbitrary"),
            vmem_limit_bytes=vmem_limit,
        ),
        cost_estimate=pl.CostEstimate(
            flops=2 * Mp * Np * Kp,
            transcendentals=0,
            bytes_accessed=(Mp * Kp + Kp * Np + Np) * in_bytes
                           + Mp * Np * out_bytes,
        ),
    )(x, w_kn, b_row)

    return out_p[:M, :out_n]


def z_to_y_apply(x, weight, bias, **kw):
    """Convenience one-shot path: weight given in (N, K) PyTorch layout."""
    w_kn, b_row, out_n = prepare_z_to_y_params(weight, bias)
    return z_to_y_forward(x, w_kn, b_row, out_n=out_n, **kw)


if __name__ == "__main__":
    # TODO(synk): at the toy 8x32x16 shape this op is pure launch/DMA overhead;
    # in a real model this Linear would be fused into the surrounding graph.
    key = jax.random.PRNGKey(0)
    kx, kw, kb, kx2, kw2, kb2 = jax.random.split(key, 6)

    # --- Test 1: shapes consistent with the module (batch=8, in=32, classes=16) ---
    batch, input_dim, num_Y_classes = 8, 32, 16
    bound = 1.0 / jnp.sqrt(jnp.float32(input_dim))
    x = jax.random.normal(kx, (batch, input_dim), dtype=jnp.float32)
    weight = jax.random.uniform(
        kw, (num_Y_classes, input_dim), minval=-bound, maxval=bound,
        dtype=jnp.float32)
    bias = jax.random.uniform(
        kb, (num_Y_classes,), minval=-bound, maxval=bound, dtype=jnp.float32)

    # Parameter re-layout done ONCE (outside the per-call forward).
    w_kn, b_row, out_n = prepare_z_to_y_params(weight, bias)
    out = jax.block_until_ready(z_to_y_forward(x, w_kn, b_row, out_n=out_n))
    ref = x @ weight.T + bias
    assert out.shape == (batch, num_Y_classes)
    assert jnp.allclose(out, ref, atol=1e-5, rtol=1e-5), "mismatch (test 1)"

    # --- Test 2: exercise the multi-step-K, divisor-tiled, padded path ---
    M2, K2, N2 = 200, 384, 272
    bound2 = 1.0 / jnp.sqrt(jnp.float32(K2))
    x2 = jax.random.normal(kx2, (M2, K2), dtype=jnp.float32)
    w2 = jax.random.uniform(
        kw2, (N2, K2), minval=-bound2, maxval=bound2, dtype=jnp.float32)
    b2 = jax.random.uniform(
        kb2, (N2,), minval=-bound2, maxval=bound2, dtype=jnp.float32)
    w2_kn, b2_row, out_n2 = prepare_z_to_y_params(w2, b2)
    out2 = jax.block_until_ready(
        z_to_y_forward(x2, w2_kn, b2_row, out_n=out_n2,
                       tm_target=64, tn_target=128, tk_target=128))
    ref2 = x2 @ w2.T + b2
    assert out2.shape == (M2, N2)
    assert jnp.allclose(out2, ref2, atol=1e-4, rtol=1e-4), "mismatch (test 2)"

    print("KERNEL_OK")
</pallas_src>

<mosaic_0001>
module attributes {stable_mosaic.version = 11 : i64} {
  func.func @_linear_kernel_single_k(%arg0: i32, %arg1: i32, %arg2: i32, %arg3: memref<8x128xf32, #tpu.memory_space<vmem>>, %arg4: memref<128x128xf32, #tpu.memory_space<vmem>>, %arg5: memref<1x128xf32, #tpu.memory_space<vmem>>, %arg6: memref<8x128xf32, #tpu.memory_space<vmem>>) attributes {dimension_semantics = [#tpu.dimension_semantics<parallel>, #tpu.dimension_semantics<parallel>, #tpu.dimension_semantics<arbitrary>], iteration_bounds = array<i64: 1, 1, 1>, scalar_prefetch = 0 : i64, scratch_operands = 0 : i64, tpu.core_type = #tpu.core_type<tc>, window_params = [{transform_indices = @transform_0, window_bounds = array<i64: 8, 128>}, {transform_indices = @transform_1, window_bounds = array<i64: 128, 128>}, {transform_indices = @transform_2, window_bounds = array<i64: 1, 128>}, {transform_indices = @transform_3, window_bounds = array<i64: 8, 128>}]} {
    %c0 = arith.constant 0 : index
    %c0_0 = arith.constant 0 : index
    %0 = vector.load %arg3[%c0, %c0_0] : memref<8x128xf32, #tpu.memory_space<vmem>>, vector<8x128xf32>
    %c0_1 = arith.constant 0 : index
    %c0_2 = arith.constant 0 : index
    %1 = vector.load %arg4[%c0_1, %c0_2] : memref<128x128xf32, #tpu.memory_space<vmem>>, vector<128x128xf32>
    %cst = arith.constant dense<0.000000e+00> : vector<8x128xf32>
    %2 = tpu.matmul %0, %1, %cst {dimension_numbers = #tpu.dot_dimension_numbers<[1], [0], [0], [1], [0, 0, 1, 1], [], []>} : vector<8x128xf32>, vector<128x128xf32>, vector<8x128xf32> -> vector<8x128xf32>
    %c0_3 = arith.constant 0 : index
    %c0_4 = arith.constant 0 : index
    %3 = vector.load %arg5[%c0_3, %c0_4] : memref<1x128xf32, #tpu.memory_space<vmem>>, vector<1x128xf32>
    %4 = vector.broadcast %3 : vector<1x128xf32> to vector<8x128xf32>
    %5 = arith.addf %2, %4 : vector<8x128xf32>
    %c0_5 = arith.constant 0 : index
    %c0_6 = arith.constant 0 : index
    %6 = vector.load %arg6[%c0_5, %c0_6] : memref<8x128xf32, #tpu.memory_space<vmem>>, vector<8x128xf32>
    tpu.vector_store %arg6[%c0_5, %c0_6], %5 {strides = array<i32>} : memref<8x128xf32, #tpu.memory_space<vmem>>, vector<8x128xf32>,
    return
  }
  func.func @transform_0(%arg0: i32, %arg1: i32, %arg2: i32) -> (i32, i32) {
    %c0_i32 = arith.constant 0 : i32
    return %arg0, %arg2 : i32, i32
  }
  func.func @transform_1(%arg0: i32, %arg1: i32, %arg2: i32) -> (i32, i32) {
    %c0_i32 = arith.constant 0 : i32
    return %arg2, %arg1 : i32, i32
  }
  func.func @transform_2(%arg0: i32, %arg1: i32, %arg2: i32) -> (i32, i32) {
    %c0_i32 = arith.constant 0 : i32
    %c0_i32_0 = arith.constant 0 : i32
    return %c0_i32, %arg1 : i32, i32
  }
  func.func @transform_3(%arg0: i32, %arg1: i32, %arg2: i32) -> (i32, i32) {
    %c0_i32 = arith.constant 0 : i32
    return %arg0, %arg1 : i32, i32
  }
}

</mosaic_0001>

<llo_original>
// kernel: z_to_y_forward.1
$region0: #{z_to_y_forward.1}
  #allocation0 [shape = 'u32[]', space=smem, size = 0x4, offset = 0x4, fixed_abs, tag = 'smem constant byte address 0x4 - core index']
  #allocation1 [shape = 'u32[144,128]{1,0:T(1,128)}', space=vmem, size = 0x12000, scoped, tag = 'internal scratch']
  %s0 = inlined_call_operand.vmem [shape: f32[8,128], index: 0, kind: input, shape index: {}]
  %s1 = inlined_call_operand.hbm [shape: f32[128,128], index: 1, kind: input, shape index: {}]
  %s2 = inlined_call_operand.vmem [shape: f32[1,128], index: 2, kind: input, shape index: {}]
  %s3 = inlined_call_operand.hbm [shape: f32[8,128], index: 3, kind: output, shape index: {}]
  %s4 = sld [smem:[#allocation0]]
  $region26: #{z_to_y_forward.1} parent=0
    _
  %s6 = ssub.s32 1, %s4
  %s7 = scalar_select 0, %s6, %s4
  $region1: #{z_to_y_forward.1} parent=0
    #allocation2 [shape = 'u8[65536]{0}', space=vmem, size = 0x10000, scoped, tag = 'input window, operand 1, single buffered']
    #allocation3 [shape = 's32[1]{0}', space=sflag, size = 0x4, scoped, tag = 'scoped memory for z_to_y_forward.1']
    #allocation4 [shape = 's32[1]{0}', space=sflag, size = 0x4, scoped, tag = 'scoped memory for z_to_y_forward.1']
    #allocation5 [shape = 'u8[4096]{0}', space=vmem, size = 0x1000, scoped, tag = 'output window, operand 0, single buffered']
    %8 = vsyncpa [#allocation3], 0
    %9 = vsyncpa [#allocation4], 0
    // Predicated region
    $region2: #{z_to_y_forward.1} parent=1 // pred_check
      _
    $region3: #{z_to_y_forward.1} parent=1 // pred_check_branch
      %11 = sbr.rel (0) target = $region5
    $region4: #{z_to_y_forward.1} parent=1 // pred_region
      _
    $region5: #{z_to_y_forward.1} parent=1 // pred_fallthru
      _
    // Predicated region
    $region6: #{z_to_y_forward.1} parent=1 // pred_check
      _
    $region7: #{z_to_y_forward.1} parent=1 // pred_check_branch
      %13 = sbr.rel (0) target = $region9
    $region8: #{z_to_y_forward.1} parent=1 // pred_region
      %s15 = ssub.s32 2048, 2048
      %16 = vsyncadd [#allocation3], %s15
      %s17 = sshll.u32 [#allocation2], 4
      %s18 = int_to_ptr.vmem [resolvable:$true] %s17
      %23 = dma.hbm_to_vmem [thread:$0]  %s1, 2048, %s18, [#allocation3], 128, 128, 8
    $region9: #{z_to_y_forward.1} parent=1 // pred_fallthru
      _
    // Predicated region
    $region10: #{z_to_y_forward.1} parent=1 // pred_check
      _
    $region11: #{z_to_y_forward.1} parent=1 // pred_check_branch
      %25 = sbr.rel (0) target = $region13
    $region12: #{z_to_y_forward.1} parent=1 // pred_region
      _
    $region13: #{z_to_y_forward.1} parent=1 // pred_fallthru
      _
    // Predicated region
    $region14: #{z_to_y_forward.1} parent=1 // pred_check
      _
    $region15: #{z_to_y_forward.1} parent=1 // pred_check_branch
      %27 = sbr.rel (0) target = $region17
    $region16: #{z_to_y_forward.1} parent=1 // pred_region
      %28 = dma.done [#allocation3], 2048
    $region17: #{z_to_y_forward.1} parent=1 // pred_fallthru
      _
    %v29 = vld [vmem:[%s0] sm:$0xff]
    %v30 = vld [vmem:[#allocation2] sm:$0xff]
    %v31 = vld [vmem:[#allocation2 + $0x8] sm:$0xff]
    %v32 = vld [vmem:[#allocation2 + $0x10] sm:$0xff]
    %v33 = vld [vmem:[#allocation2 + $0x18] sm:$0xff]
    %v34 = vld [vmem:[#allocation2 + $0x20] sm:$0xff]
    %v35 = vld [vmem:[#allocation2 + $0x28] sm:$0xff]
    %v36 = vld [vmem:[#allocation2 + $0x30] sm:$0xff]
    %v37 = vld [vmem:[#allocation2 + $0x38] sm:$0xff]
    %v38 = vld [vmem:[#allocation2 + $0x40] sm:$0xff]
    %v39 = vld [vmem:[#allocation2 + $0x48] sm:$0xff]
    %v40 = vld [vmem:[#allocation2 + $0x50] sm:$0xff]
    %v41 = vld [vmem:[#allocation2 + $0x58] sm:$0xff]
    %v42 = vld [vmem:[#allocation2 + $0x60] sm:$0xff]
    %v43 = vld [vmem:[#allocation2 + $0x68] sm:$0xff]
    %v44 = vld [vmem:[#allocation2 + $0x70] sm:$0xff]
    %v45 = vld [vmem:[#allocation2 + $0x78] sm:$0xff]
    %v46 = vld [vmem:[%s2] sm:$0x1]
    %v48 = vlaneseq
    %v49 = vshrl.u32 %v48, 7
    %v50 = vsub.s32 0, %v49
    %v51 = vrot.slane %v46, %v50
    %53 = vmatprep.subr.mxu0 0.0
    %54 = vmatpush1.msra.mxu0 %v30
    %55 = vmatprep.subr.mxu0 0.0
    %56 = vmatpush1.msra.mxu0 %v31
    %57 = vmatprep.subr.mxu0 0.0
    %58 = vmatpush1.msra.mxu0 %v32
    %59 = vmatprep.subr.mxu0 0.0
    %60 = vmatpush1.msra.mxu0 %v33
    %61 = vmatprep.subr.mxu0 0.0
    %62 = vmatpush1.msra.mxu0 %v34
    %63 = vmatprep.subr.mxu0 0.0
    %64 = vmatpush1.msra.mxu0 %v35
    %65 = vmatprep.subr.mxu0 0.0
    %66 = vmatpush1.msra.mxu0 %v36
    %67 = vmatprep.subr.mxu0 0.0
    %68 = vmatpush1.msra.mxu0 %v37
    %69 = vmatprep.subr.mxu0 0.0
    %70 = vmatpush1.msra.mxu0 %v38
    %71 = vmatprep.subr.mxu0 0.0
    %72 = vmatpush1.msra.mxu0 %v39
    %73 = vmatprep.subr.mxu0 0.0
    %74 = vmatpush1.msra.mxu0 %v40
    %75 = vmatprep.subr.mxu0 0.0
    %76 = vmatpush1.msra.mxu0 %v41
    %77 = vmatprep.subr.mxu0 0.0
    %78 = vmatpush1.msra.mxu0 %v42
    %79 = vmatprep.subr.mxu0 0.0
    %80 = vmatpush1.msra.mxu0 %v43
    %81 = vmatprep.subr.mxu0 0.0
    %82 = vmatpush1.msra.mxu0 %v44
    %83 = vmatprep.subr.mxu0 0.0
    %84 = vmatpush1.msra.mxu0 %v45
    %85 = vmatprep.subr.mxu0 0.0
    %86 = vmatpush1.msra.mxu0 0.0
    %87 = vmatprep.subr.mxu0 0.0
    %88 = vmatpush1.msra.mxu0 0.0
    %89 = vmatprep.subr.mxu0 0.0
    %90 = vmatpush1.msra.mxu0 0.0
    %91 = vmatprep.subr.mxu0 0.0
    %92 = vmatpush1.msra.mxu0 0.0
    %93 = vmatprep.subr.mxu0 0.0
    %94 = vmatpush1.msra.mxu0 0.0
    %95 = vmatprep.subr.mxu0 0.0
    %96 = vmatpush1.msra.mxu0 0.0
    %97 = vmatprep.subr.mxu0 0.0
    %98 = vmatpush1.msra.mxu0 0.0
    %99 = vmatprep.subr.mxu0 0.0
    %100 = vmatpush1.msra.mxu0 0.0
    %101 = vmatprep.subr.mxu0 0.0
    %102 = vmatpush1.msra.mxu0 0.0
    %103 = vmatprep.subr.mxu0 0.0
    %104 = vmatpush1.msra.mxu0 0.0
    %105 = vmatprep.subr.mxu0 0.0
    %106 = vmatpush1.msra.mxu0 0.0
    %107 = vmatprep.subr.mxu0 0.0
    %108 = vmatpush1.msra.mxu0 0.0
    %109 = vmatprep.subr.mxu0 0.0
    %110 = vmatpush1.msra.mxu0 0.0
    %111 = vmatprep.subr.mxu0 0.0
    %112 = vmatpush1.msra.mxu0 0.0
    %113 = vmatprep.subr.mxu0 0.0
    %114 = vmatpush1.msra.mxu0 0.0
    %115 = vmatprep.subr.mxu0 0.0
    %116 = vmatpush1.msra.mxu0 0.0
    %117 = vmatprep.mubr.f32.mxu0 0.0
    %118 = vmatmul.mubr.f32.gmra.mrb[0].mxu0 %v29
    %v119 = vpop.f32.mrb[0].mxu0
    %v120 = vadd.f32 %v51, %v119
    %v121 = vpop.f32.mrb[0].mxu0
    %122 = vdwg.mxu0
    %123 = vst [vmem:[#allocation5] sm:$0xff] %v120
    // Predicated region
    $region18: #{z_to_y_forward.1} parent=1 // pred_check
      _
    $region19: #{z_to_y_forward.1} parent=1 // pred_check_branch
      %125 = sbr.rel (0) target = $region21
    $region20: #{z_to_y_forward.1} parent=1 // pred_region
      %s127 = ssub.s32 128, 128
      %128 = vsyncadd [#allocation4], %s127
      %s130 = sshll.u32 [#allocation5], 4
      %s131 = int_to_ptr.vmem [resolvable:$true] %s130
      %133 = dma.vmem_to_hbm [thread:$0]  %s131, 128, %s3, [#allocation4]
    $region21: #{z_to_y_forward.1} parent=1 // pred_fallthru
      _
    // Predicated region
    $region22: #{z_to_y_forward.1} parent=1 // pred_check
      _
    $region23: #{z_to_y_forward.1} parent=1 // pred_check_branch
      %135 = sbr.rel (0) target = $region25
    $region24: #{z_to_y_forward.1} parent=1 // pred_region
      %136 = dma.done [#allocation4], 128
    $region25: #{z_to_y_forward.1} parent=1 // pred_fallthru
      _
    %137 = vsyncpa [#allocation3], 1
    %138 = vsyncpa [#allocation4], 1

</llo_original>
